<compile_context>
chip_gen: v6e
topology: v6e:2x2x1
jax: 0.10.0
libtpu: 0.0.40
codegen_flags: <defaults>
</compile_context>

<pallas_src>
import functools
import numpy as np

import jax
import jax.numpy as jnp
from jax.experimental import pallas as pl
from jax.experimental.pallas import tpu as pltpu


# -----------------------------------------------------------------------------
# Pallas kernel 1: EMA parameter update   s <- s - (1 - decay) * (s - p)
# -----------------------------------------------------------------------------
_EMA_LANES = 512          # lane-dense rows: unmasked vst, wide DMA descriptors
_EMA_BLK_ROWS = 1024      # 1024 x 512 x 4B = 2 MiB / operand block (v5e-safe)
# NOTE: on v7x/v6e a 2048-row block would shave per-grid-step overhead, but it
# would exceed v5e's 16 MiB scoped-VMEM default; keep 1024 for portability.


def _ema_tiling(n_elems):
    """(padded_rows, block_rows) for a flat f32 element count."""
    rows = -(-max(n_elems, 1) // _EMA_LANES)
    if rows <= 8:
        return 8, 8                                   # tiny model: one (8,512) block
    if rows <= 2 * _EMA_BLK_ROWS:
        rows = -(-rows // 16) * 16                    # 2 blocks, each multiple of 8
        return rows, rows // 2                        # grid=2 -> megacore on v7x
    rows = -(-rows // _EMA_BLK_ROWS) * _EMA_BLK_ROWS
    return rows, _EMA_BLK_ROWS                        # grid >= 3


def _flatten_to_lanes(leaves, rows):
    """Concatenate float leaves into a zero-padded, lane-dense (rows, 512) f32."""
    flat = jnp.concatenate([jnp.ravel(l).astype(jnp.float32) for l in leaves])
    flat = jnp.pad(flat, (0, rows * _EMA_LANES - flat.shape[0]))
    return flat.reshape(rows, _EMA_LANES)


def _ema_kernel(s_ref, p_ref, omd_ref, o_ref):
    omd = omd_ref[0]                       # (1 - decay), host-computed, in SMEM
    s = s_ref[...]
    o_ref[...] = s - omd * (s - p_ref[...])


def _ema_pallas(s2d, p2d, omd, blk_r):
    R, C = s2d.shape
    grid = R // blk_r
    # 3 (R,C) operands x 2 pipeline buffers, plus slack for internal scratch.
    vmem_bytes = max(3 * 2 * blk_r * C * 4 + (2 << 20), 8 << 20)
    return pl.pallas_call(
        _ema_kernel,
        out_shape=jax.ShapeDtypeStruct((R, C), s2d.dtype),
        grid=(grid,),
        in_specs=[
            pl.BlockSpec((blk_r, C), lambda i: (i, 0)),                 # EMA state
            pl.BlockSpec((blk_r, C), lambda i: (i, 0)),                 # new params
            pl.BlockSpec(memory_space=pltpu.MemorySpace.SMEM),          # (1-decay)
        ],
        out_specs=pl.BlockSpec((blk_r, C), lambda i: (i, 0)),
        compiler_params=pltpu.CompilerParams(
            dimension_semantics=("parallel",),
            vmem_limit_bytes=int(vmem_bytes),
        ),
        cost_estimate=pl.CostEstimate(
            flops=2 * R * C, transcendentals=0, bytes_accessed=3 * R * C * 4),
        # operand 0 == s2d (EMA state) -> aliased in-place to the single output.
        input_output_aliases={0: 0},
    )(s2d, p2d, omd)


@functools.partial(jax.jit, static_argnums=(0, 1), donate_argnums=(3,))
def _ema_step_jit(rows, blk_r, omd, ema_flat, *param_leaves):
    # Flatten of the TRAINING params is traced in the same jit as the kernel:
    # one dispatch per step, concat+pad fused by XLA, state buffer donated.
    p2d = _flatten_to_lanes(param_leaves, rows)
    return _ema_pallas(ema_flat, p2d, omd, blk_r)


# -----------------------------------------------------------------------------
# Pallas kernel 2: conv-as-matmul (+ bias + ReLU) for the wrapped model forward
# -----------------------------------------------------------------------------
def _conv_matmul_kernel(x_ref, w_ref, b_ref, o_ref):
    acc = jnp.dot(x_ref[...], w_ref[...], preferred_element_type=jnp.float32)
    o_ref[...] = jnp.maximum(acc + b_ref[...], 0.0).astype(o_ref.dtype)


@jax.jit
def conv_relu_forward(x_nchw, weight, bias):
    """Conv2d(k=3, stride=1, pad=1) + ReLU, matmul hot-path in Pallas.

    x_nchw: (B, C, H, W) f32, weight: (OC, C, 3, 3), bias: (OC,)
    returns: (B, OC, H, W) f32.  All glue (im2col, pads, output restore) is
    traced inside this single jit, so it fuses instead of dispatching eagerly.
    """
    B, C, H, W = x_nchw.shape
    OC = weight.shape[0]
    K = 3
    Kdim = C * K * K                 # 36 -- contraction dim left unpadded
    Np = 128                         # lane-dense output columns
    M = B * H * W                    # 512 rows -> one MXU block

    # im2col (glue): (B*H*W, C*K*K) rows with (C, ky, kx) ordering.
    xp = jnp.pad(x_nchw, ((0, 0), (0, 0), (1, 1), (1, 1)))
    cols = [xp[:, :, ky:ky + H, kx:kx + W] for ky in range(K) for kx in range(K)]
    patches = jnp.stack(cols, axis=2)                      # (B, C, K*K, H, W)
    patches = patches.transpose(0, 3, 4, 1, 2).reshape(M, Kdim).astype(jnp.float32)

    w_mat = weight.reshape(OC, Kdim).T                     # (Kdim, OC)
    w_p = jnp.pad(w_mat, ((0, 0), (0, Np - OC))).astype(jnp.float32)
    b_p = jnp.pad(bias, (0, Np - OC)).astype(jnp.float32).reshape(1, Np)

    out_p = pl.pallas_call(
        _conv_matmul_kernel,
        out_shape=jax.ShapeDtypeStruct((M, Np), jnp.float32),
        grid=(1,),
        in_specs=[
            pl.BlockSpec((M, Kdim), lambda i: (0, 0)),   # full-dim block (36 lanes)
            pl.BlockSpec((Kdim, Np), lambda i: (0, 0)),
            pl.BlockSpec((1, Np), lambda i: (0, 0)),
        ],
        out_specs=pl.BlockSpec((M, Np), lambda i: (0, 0)),
    )(patches, w_p, b_p)

    # back to NCHW (PyTorch convention); fused inside this jit.
    return out_p[:, :OC].reshape(B, H, W, OC).transpose(0, 3, 1, 2)


# -----------------------------------------------------------------------------
# ModelEMA equivalent
# -----------------------------------------------------------------------------
def default_scheduler(step):
    # simple EMA-decay warmup schedule
    return min(0.9999, (1.0 + step) / (10.0 + step))


class ModelEMAPallas:
    """JAX/Pallas port of ModelEMA for a Conv2d+ReLU inner model.

    Float EMA shadow params live as one resident flat, padded, lane-dense f32
    buffer; step() is a single jitted (flatten + tiled in-place Pallas kernel)
    call.  Non-float leaves are kept as a frozen copy (never EMA'd).  Original
    leaf dtypes are restored when parameters are materialized.
    """

    def __init__(self, params, scheduler, start_step=0, interval=1):
        leaves, treedef = jax.tree_util.tree_flatten(params)
        leaves = [jnp.asarray(l) for l in leaves]
        self._treedef = treedef
        self._shapes = [l.shape for l in leaves]
        self._dtypes = [l.dtype for l in leaves]
        self._sizes = [int(np.prod(s)) for s in self._shapes]
        self._is_float = [jnp.issubdtype(d, jnp.floating) for d in self._dtypes]
        # non-float leaves (int buffers, counters) are excluded from the EMA
        # buffer -- PyTorch ModelEMA.step only touches (float) parameters.
        self._frozen = [l for l, f in zip(leaves, self._is_float) if not f]
        float_leaves = [l for l, f in zip(leaves, self._is_float) if f]
        n_float = sum(sz for sz, f in zip(self._sizes, self._is_float) if f)
        self._rows, self._blk = _ema_tiling(n_float)
        # deepcopy-equivalent: flat EMA master copy (f32), padded tail stays 0
        self.ema_flat = _flatten_to_lanes(float_leaves, self._rows)
        self.train_params = params
        self.scheduler = scheduler
        self.optimization_step = start_step
        self.interval = interval

    # --- ModelEMA.step -------------------------------------------------------
    def step(self, params, step=0):
        self.optimization_step += 1
        if step % self.interval == 0:
            # hoist (1 - decay) to the host; kernel never recomputes it
            one_minus_decay = 1.0 - float(self.scheduler(step))
            leaves = jax.tree_util.tree_leaves(params)
            float_leaves = [l for l, f in zip(leaves, self._is_float) if f]
            self.ema_flat = _ema_step_jit(
                self._rows, self._blk,
                jnp.asarray([one_minus_decay], jnp.float32),
                self.ema_flat, *float_leaves)

    # --- parameter access / ModelEMA.copy_to ---------------------------------
    def ema_params(self):
        flat = self.ema_flat.reshape(-1)
        out, off, fi = [], 0, 0
        for sh, dt, sz, isf in zip(self._shapes, self._dtypes,
                                   self._sizes, self._is_float):
            if isf:
                out.append(flat[off:off + sz].reshape(sh).astype(dt))
                off += sz
            else:
                out.append(self._frozen[fi])
                fi += 1
        return jax.tree_util.tree_unflatten(self._treedef, out)

    def copy_to(self):
        return self.ema_params()

    # --- ModelEMA.forward: wrapped model's forward, using EMA weights --------
    def forward(self, x):
        p = self.ema_params()
        return conv_relu_forward(x, p["weight"], p["bias"])

    __call__ = forward

    # TODO(synk): state_dict / _load_from_state_dict / .to(device, dtype) are
    # host-side bookkeeping with no kernel content; not ported here.


# -----------------------------------------------------------------------------
if __name__ == "__main__":
    key = jax.random.PRNGKey(0)
    k_w, k_b, k_x, k_dw, k_db = jax.random.split(key, 5)

    B, C, H, W, OC = 2, 4, 16, 16, 8

    # deterministic "checkpoint" for the wrapped Conv2d(4, 8, 3, padding=1)
    init_params = {
        "weight": (0.1 * jax.random.normal(k_w, (OC, C, 3, 3))).astype(jnp.float32),
        "bias": (0.1 * jax.random.normal(k_b, (OC,))).astype(jnp.float32),
    }
    # "trained" model parameters (what the optimizer produced this step)
    train_params = {
        "weight": init_params["weight"]
        + (0.05 * jax.random.normal(k_dw, (OC, C, 3, 3))).astype(jnp.float32),
        "bias": init_params["bias"]
        + (0.05 * jax.random.normal(k_db, (OC,))).astype(jnp.float32),
    }

    x = jax.random.normal(k_x, (B, C, H, W)).astype(jnp.float32)

    ema = ModelEMAPallas(init_params, default_scheduler, start_step=0, interval=1)

    # --- EMA step (single jitted flatten + tiled in-place Pallas kernel) ---
    step_idx = 3
    ema.step(train_params, step=step_idx)

    decay = default_scheduler(step_idx)
    ref_ema = jax.tree_util.tree_map(
        lambda s, p: s - (1.0 - decay) * (s - p), init_params, train_params)
    ema_tree = ema.copy_to()
    for name in ("weight", "bias"):
        np.testing.assert_allclose(np.asarray(ema_tree[name]),
                                   np.asarray(ref_ema[name]),
                                   rtol=1e-5, atol=1e-5)

    # run a second step to exercise the aliased / donated in-place buffer path
    step_idx2 = 4
    ema.step(train_params, step=step_idx2)
    decay2 = default_scheduler(step_idx2)
    ref_ema = jax.tree_util.tree_map(
        lambda s, p: s - (1.0 - decay2) * (s - p), ref_ema, train_params)
    ema_tree = ema.copy_to()
    for name in ("weight", "bias"):
        np.testing.assert_allclose(np.asarray(ema_tree[name]),
                                   np.asarray(ref_ema[name]),
                                   rtol=1e-5, atol=1e-5)

    # --- forward of the EMA-tracked model (single-block Pallas matmul) ---
    y = ema(x)
    y = jax.block_until_ready(y)

    # pure-JAX reference for the conv forward
    y_ref = jax.lax.conv_general_dilated(
        x, ema_tree["weight"], window_strides=(1, 1), padding="SAME",
        dimension_numbers=("NCHW", "OIHW", "NCHW"))
    y_ref = jnp.maximum(y_ref + ema_tree["bias"][None, :, None, None], 0.0)
    np.testing.assert_allclose(np.asarray(y), np.asarray(y_ref),
                               rtol=1e-4, atol=1e-4)

    assert y.shape == (B, OC, H, W)
    print("KERNEL_OK")
</pallas_src>

<mosaic_0001>
module attributes {stable_mosaic.version = 11 : i64} {
  func.func @_ema_kernel(%arg0: i32, %arg1: memref<8x512xf32, #tpu.memory_space<vmem>>, %arg2: memref<8x512xf32, #tpu.memory_space<vmem>>, %arg3: memref<1xf32, #tpu.memory_space<smem>>, %arg4: memref<8x512xf32, #tpu.memory_space<vmem>>) attributes {dimension_semantics = [#tpu.dimension_semantics<parallel>], iteration_bounds = array<i64: 1>, scalar_prefetch = 0 : i64, scratch_operands = 0 : i64, tpu.core_type = #tpu.core_type<tc>, window_params = [{transform_indices = @transform_0, window_bounds = array<i64: 8, 512>}, {transform_indices = @transform_1, window_bounds = array<i64: 8, 512>}, {transform_indices = @transform_2, window_bounds = array<i64: 1>}, {transform_indices = @transform_3, window_bounds = array<i64: 8, 512>}]} {
    %c0 = arith.constant 0 : index
    %0 = memref.load %arg3[%c0] : memref<1xf32, #tpu.memory_space<smem>>
    %c0_0 = arith.constant 0 : index
    %c0_1 = arith.constant 0 : index
    %1 = vector.load %arg1[%c0_0, %c0_1] : memref<8x512xf32, #tpu.memory_space<vmem>>, vector<8x512xf32>
    %c0_2 = arith.constant 0 : index
    %c0_3 = arith.constant 0 : index
    %2 = vector.load %arg2[%c0_2, %c0_3] : memref<8x512xf32, #tpu.memory_space<vmem>>, vector<8x512xf32>
    %3 = arith.subf %1, %2 : vector<8x512xf32>
    %4 = vector.broadcast %0 : f32 to vector<8x512xf32>
    %5 = arith.mulf %4, %3 : vector<8x512xf32>
    %6 = arith.subf %1, %5 : vector<8x512xf32>
    %c0_4 = arith.constant 0 : index
    %c0_5 = arith.constant 0 : index
    %7 = vector.load %arg4[%c0_4, %c0_5] : memref<8x512xf32, #tpu.memory_space<vmem>>, vector<8x512xf32>
    tpu.vector_store %arg4[%c0_4, %c0_5], %6 {strides = array<i32>} : memref<8x512xf32, #tpu.memory_space<vmem>>, vector<8x512xf32>,
    return
  }
  func.func @transform_0(%arg0: i32) -> (i32, i32) {
    %c0_i32 = arith.constant 0 : i32
    %c0_i32_0 = arith.constant 0 : i32
    return %arg0, %c0_i32 : i32, i32
  }
  func.func @transform_1(%arg0: i32) -> (i32, i32) {
    %c0_i32 = arith.constant 0 : i32
    %c0_i32_0 = arith.constant 0 : i32
    return %arg0, %c0_i32 : i32, i32
  }
  func.func @transform_2(%arg0: i32) -> i32 {
    %c0_i32 = arith.constant 0 : i32
    %c0_i32_0 = arith.constant 0 : i32
    return %c0_i32 : i32
  }
  func.func @transform_3(%arg0: i32) -> (i32, i32) {
    %c0_i32 = arith.constant 0 : i32
    %c0_i32_0 = arith.constant 0 : i32
    return %arg0, %c0_i32 : i32, i32
  }
}

</mosaic_0001>

<llo_original>
// kernel: _ema_step_jit.1
$region0: #{_ema_step_jit.1}
  #allocation0 [shape = 'u32[]', space=smem, size = 0x4, offset = 0x4, fixed_abs, tag = 'smem constant byte address 0x4 - core index']
  #allocation1 [shape = 'u32[144,128]{1,0:T(1,128)}', space=vmem, size = 0x12000, scoped, tag = 'internal scratch']
  #allocation2 [shape = 'f32[1]{0:T(128)S(6)}', space=smem, size = 0x200, scoped, tag = 'scoped memory for _ema_step_jit.1']
  %s0 = inlined_call_operand.hbm [shape: f32[8,512], index: 0, kind: input, shape index: {}, may-alias: {0,3}]
  %s1 = inlined_call_operand.vmem [shape: f32[8,512], index: 1, kind: input, shape index: {}]
  %s2 = inlined_call_operand.<no memory space> [shape: f32[1], index: 2, kind: input, shape index: {}]
  %s3 = inlined_call_operand.hbm [shape: f32[8,512], index: 3, kind: output, shape index: {}, may-alias: {0,3}]
  %s4 = sld [smem:[#allocation0]]
  $region26: #{_ema_step_jit.1} parent=0
    _
  %s6 = ssub.s32 1, %s4
  %s7 = scalar_select 0, %s6, %s4
  %8 = sst [smem:[#allocation2]] %s2
  $region1: #{_ema_step_jit.1} parent=0
    #allocation3 [shape = 'u8[16384]{0}', space=vmem, size = 0x4000, scoped, tag = 'input window, operand 0, single buffered']
    #allocation4 [shape = 's32[1]{0}', space=sflag, size = 0x4, scoped, tag = 'scoped memory for _ema_step_jit.1']
    #allocation5 [shape = 's32[1]{0}', space=sflag, size = 0x4, scoped, tag = 'scoped memory for _ema_step_jit.1']
    #allocation6 [shape = 'u8[16384]{0}', space=vmem, size = 0x4000, scoped, tag = 'output window, operand 0, single buffered']
    %9 = vsyncpa [#allocation4], 0
    %10 = vsyncpa [#allocation5], 0
    // Predicated region
    $region2: #{_ema_step_jit.1} parent=1 // pred_check
      _
    $region3: #{_ema_step_jit.1} parent=1 // pred_check_branch
      %12 = sbr.rel (0) target = $region5
    $region4: #{_ema_step_jit.1} parent=1 // pred_region
      %s14 = ssub.s32 512, 512
      %15 = vsyncadd [#allocation4], %s14
      %s17 = sshll.u32 [#allocation3], 4
      %s18 = int_to_ptr.vmem [resolvable:$true] %s17
      %20 = dma.hbm_to_vmem [thread:$0]  %s0, 512, %s18, [#allocation4]
    $region5: #{_ema_step_jit.1} parent=1 // pred_fallthru
      _
    // Predicated region
    $region6: #{_ema_step_jit.1} parent=1 // pred_check
      _
    $region7: #{_ema_step_jit.1} parent=1 // pred_check_branch
      %22 = sbr.rel (0) target = $region9
    $region8: #{_ema_step_jit.1} parent=1 // pred_region
      _
    $region9: #{_ema_step_jit.1} parent=1 // pred_fallthru
      _
    // Predicated region
    $region10: #{_ema_step_jit.1} parent=1 // pred_check
      _
    $region11: #{_ema_step_jit.1} parent=1 // pred_check_branch
      %24 = sbr.rel (0) target = $region13
    $region12: #{_ema_step_jit.1} parent=1 // pred_region
      _
    $region13: #{_ema_step_jit.1} parent=1 // pred_fallthru
      _
    // Predicated region
    $region14: #{_ema_step_jit.1} parent=1 // pred_check
      _
    $region15: #{_ema_step_jit.1} parent=1 // pred_check_branch
      %26 = sbr.rel (0) target = $region17
    $region16: #{_ema_step_jit.1} parent=1 // pred_region
      %27 = dma.done [#allocation4], 512
    $region17: #{_ema_step_jit.1} parent=1 // pred_fallthru
      _
    %s28 = sld [smem:[#allocation2]]
    %v29 = vld [vmem:[#allocation3] sm:$0xff]
    %v30 = vld [vmem:[#allocation3 + $0x8] sm:$0xff]
    %v31 = vld [vmem:[#allocation3 + $0x10] sm:$0xff]
    %v32 = vld [vmem:[#allocation3 + $0x18] sm:$0xff]
    %v33 = vld [vmem:[%s1] sm:$0xff]
    %v34 = vld [vmem:[%s1 + $0x8] sm:$0xff]
    %v35 = vld [vmem:[%s1 + $0x10] sm:$0xff]
    %v36 = vld [vmem:[%s1 + $0x18] sm:$0xff]
    %v37 = vsub.f32 %v29, %v33
    %v38 = vsub.f32 %v30, %v34
    %v39 = vsub.f32 %v31, %v35
    %v40 = vsub.f32 %v32, %v36
    %v41 = vstv %s28
    %v42 = vmul.f32 %v41, %v37
    %v43 = vmul.f32 %v41, %v38
    %v44 = vmul.f32 %v41, %v39
    %v45 = vmul.f32 %v41, %v40
    %v46 = vsub.f32 %v29, %v42
    %v47 = vsub.f32 %v30, %v43
    %v48 = vsub.f32 %v31, %v44
    %v49 = vsub.f32 %v32, %v45
    %50 = vst [vmem:[#allocation6] sm:$0xff] %v46
    %51 = vst [vmem:[#allocation6 + $0x8] sm:$0xff] %v47
    %52 = vst [vmem:[#allocation6 + $0x10] sm:$0xff] %v48
    %53 = vst [vmem:[#allocation6 + $0x18] sm:$0xff] %v49
    // Predicated region
    $region18: #{_ema_step_jit.1} parent=1 // pred_check
      _
    $region19: #{_ema_step_jit.1} parent=1 // pred_check_branch
      %55 = sbr.rel (0) target = $region21
    $region20: #{_ema_step_jit.1} parent=1 // pred_region
      %s57 = ssub.s32 512, 512
      %58 = vsyncadd [#allocation5], %s57
      %s60 = sshll.u32 [#allocation6], 4
      %s61 = int_to_ptr.vmem [resolvable:$true] %s60
      %63 = dma.vmem_to_hbm [thread:$0]  %s61, 512, %s3, [#allocation5]
    $region21: #{_ema_step_jit.1} parent=1 // pred_fallthru
      _
    // Predicated region
    $region22: #{_ema_step_jit.1} parent=1 // pred_check
      _
    $region23: #{_ema_step_jit.1} parent=1 // pred_check_branch
      %65 = sbr.rel (0) target = $region25
    $region24: #{_ema_step_jit.1} parent=1 // pred_region
      %66 = dma.done [#allocation5], 512
    $region25: #{_ema_step_jit.1} parent=1 // pred_fallthru
      _
    %67 = vsyncpa [#allocation4], 1
    %68 = vsyncpa [#allocation5], 1

</llo_original>
